<compile_context>
chip_gen: v5e
topology: v5e:2x2
jax: 0.10.0
libtpu: 0.0.40
codegen_flags: <defaults>
</compile_context>

<pallas_src>
import functools

import jax
import jax.numpy as jnp
from jax import lax
from jax.experimental import pallas as pl
from jax.experimental.pallas import tpu as pltpu


# ----------------------------------------------------------------------------
# Pallas kernel: one batch block (NB elements folded into lanes) per grid step.
# ----------------------------------------------------------------------------
def tempblock2_kernel(xt_ref, wc_ref, bc_ref, w1_ref, b1_ref, o_ref, *,
                      k1, dil1, t1, cout0):
    nt = xt_ref.shape[1]          # NB * t1 lanes
    nb = nt // t1                 # batch elements folded into this block

    # ---- tcn0 (+BN0, ReLU) and 1x1 downsample (+BNd, ReLU): one fused matmul.
    # Rows [:cout0] of wc are the BN-folded tcn0 weights (K = k0*cin0);
    # rows [cout0:] are the BN-folded 1x1 weights placed in the tap-(k0-1)
    # columns (the 1x1 stride-2 input is exactly that im2col tap).
    z = jnp.dot(wc_ref[...], xt_ref[...], preferred_element_type=jnp.float32)
    z = jnp.maximum(z + bc_ref[...], 0.0)
    x1 = z[:cout0, :]             # relu(bn0(tcn0(x)))        (cout0, nt)
    res = z[cout0:, :]            # relu(bnd(downsample(x)))  (cout1, nt)

    # ---- tcn1: dilated causal conv as ONE matmul with K = k1*cout0 ----------
    # Shifted taps: static lane shift + per-batch-element causal zero mask
    # (time index within each t1-wide batch slot).  The shift lowers to two
    # static lane slices + concat; pltpu.roll is a drop-in if XLU routing is
    # preferred once lane slots bind.
    tpos = None
    if nb > 1:
        tpos = lax.broadcasted_iota(jnp.int32, (1, nt), 1) % t1
    taps = [x1]
    for k in range(1, k1):
        s = k * dil1
        if s >= nt:
            taps.append(jnp.zeros_like(x1))
            continue
        shifted = jnp.concatenate(
            [jnp.zeros((cout0, s), jnp.float32), x1[:, :nt - s]], axis=1)
        if nb > 1:
            shifted = jnp.where(tpos >= s, shifted, 0.0)
        taps.append(shifted)
    x1_taps = jnp.concatenate(taps, axis=0) if k1 > 1 else x1   # (k1*cout0, nt)

    y = jnp.dot(w1_ref[...], x1_taps, preferred_element_type=jnp.float32)

    # ---- residual add + final ReLU ------------------------------------------
    o_ref[...] = jnp.maximum(y + b1_ref[...] + res, 0.0).astype(o_ref.dtype)


# ----------------------------------------------------------------------------
# Wrapper: BN folding, im2col, batch->lane folding, pallas_call.
# ----------------------------------------------------------------------------
def fold_bn(gamma, beta, mean, var, conv_bias, eps=1e-5):
    s = (gamma / jnp.sqrt(var + eps)).astype(jnp.float32)
    b = (beta + (conv_bias - mean) * s).astype(jnp.float32)
    return s, b


def tempblock2_forward(x, p, *, k0, k1, dil1, lane_target=512):
    N, cin0, T = x.shape
    t1 = (T - 1) // 2 + 1                       # output time length
    cout0 = p["w0"].shape[0]
    cout1, cin1, _ = p["w1"].shape
    assert cin1 == cout0, "module requires ch_in1 == ch_out0"

    # --- batch blocking: fold NB batch elements into the lane axis -----------
    nb = min(N, max(1, -(-lane_target // t1)))  # NB*t1 >= lane_target if possible
    g = -(-N // nb)                             # grid steps (parallel on v7x TCs)
    n_pad = g * nb
    xp = jnp.pad(x, ((0, n_pad - N), (0, 0), (0, 0))) if n_pad != N else x

    # --- im2col for the stride-2 causal tcn0 (tap k0-1 doubles as 1x1 input) -
    # NOTE: kept in the wrapper; in-kernel stride-2 extraction under the
    # batch-folded lane layout would need cross-tile relayouts. Revisit at
    # large T if the k0x HBM duplication becomes the bottleneck.
    x_c = jnp.pad(xp, ((0, 0), (0, 0), (k0 - 1, 0)))
    taps = [x_c[:, :, k::2][:, :, :t1] for k in range(k0)]       # (n_pad,cin0,t1)
    xt = jnp.stack(taps, axis=1)                                 # (n_pad,k0,cin0,t1)
    xt = xt.reshape(g, nb, k0, cin0, t1)
    xt = jnp.transpose(xt, (0, 2, 3, 1, 4)).reshape(g, k0 * cin0, nb * t1)

    # --- fold BN scales into weights, biases into per-channel vectors --------
    s0, bb0 = fold_bn(p["bn0_g"], p["bn0_b"], p["bn0_m"], p["bn0_v"], p["b0"])
    s1, bb1 = fold_bn(p["bn1_g"], p["bn1_b"], p["bn1_m"], p["bn1_v"], p["b1"])
    sds, bbds = fold_bn(p["bnd_g"], p["bnd_b"], p["bnd_m"], p["bnd_v"], p["bds"])

    w0f = (s0[:, None, None] * p["w0"]).transpose(0, 2, 1).reshape(
        cout0, k0 * cin0)                                        # [o, k*cin0+c]
    wdsf = sds[:, None] * p["wds"][:, :, 0]                      # (cout1, cin0)
    wc = jnp.zeros((cout0 + cout1, k0 * cin0), jnp.float32)
    wc = wc.at[:cout0, :].set(w0f)
    wc = wc.at[cout0:, (k0 - 1) * cin0:k0 * cin0].set(wdsf)
    bc = jnp.concatenate([bb0, bbds])[:, None]                   # (cout0+cout1, 1)

    # tap k' in the kernel is shift k'*dil1  <->  conv weight index k1-1-k'
    w1f = (s1[:, None, None] * p["w1"])[:, :, ::-1]
    w1f = jnp.transpose(w1f, (0, 2, 1)).reshape(cout1, k1 * cin1)
    b1c = bb1[:, None]                                           # (cout1, 1)

    kern = functools.partial(tempblock2_kernel,
                             k1=k1, dil1=dil1, t1=t1, cout0=cout0)

    out = pl.pallas_call(
        kern,
        out_shape=jax.ShapeDtypeStruct((g, cout1, nb * t1), jnp.float32),
        grid=(g,),
        in_specs=[
            pl.BlockSpec((None, k0 * cin0, nb * t1), lambda i: (i, 0, 0)),
            pl.BlockSpec((cout0 + cout1, k0 * cin0), lambda i: (0, 0)),
            pl.BlockSpec((cout0 + cout1, 1), lambda i: (0, 0)),
            pl.BlockSpec((cout1, k1 * cin1), lambda i: (0, 0)),
            pl.BlockSpec((cout1, 1), lambda i: (0, 0)),
        ],
        out_specs=pl.BlockSpec((None, cout1, nb * t1), lambda i: (i, 0, 0)),
        compiler_params=pltpu.CompilerParams(
            dimension_semantics=("parallel",)),
    )(xt, wc, bc, w1f, b1c)

    # unfold lanes back to (batch, channel, time) and trim batch padding
    out = out.reshape(g, cout1, nb, t1)
    out = jnp.transpose(out, (0, 2, 1, 3)).reshape(n_pad, cout1, t1)
    return out[:N]


# ----------------------------------------------------------------------------
# Pure-JAX reference (same semantics as the PyTorch module, eval-mode BN).
# ----------------------------------------------------------------------------
def reference_forward(x, p, *, k0, k1, dil1, eps=1e-5):
    dn = ("NCH", "OIH", "NCH")

    def bn(y, g, b, m, v):
        return (y - m[None, :, None]) / jnp.sqrt(v[None, :, None] + eps) \
            * g[None, :, None] + b[None, :, None]

    x_p0 = jnp.pad(x, ((0, 0), (0, 0), (k0 - 1, 0)))
    y0 = lax.conv_general_dilated(
        x_p0, p["w0"], window_strides=(2,), padding="VALID",
        dimension_numbers=dn, precision=lax.Precision.HIGHEST)
    y0 = y0 + p["b0"][None, :, None]
    x1 = jnp.maximum(bn(y0, p["bn0_g"], p["bn0_b"], p["bn0_m"], p["bn0_v"]), 0.)

    x1p = jnp.pad(x1, ((0, 0), (0, 0), ((k1 - 1) * dil1, 0)))
    y1 = lax.conv_general_dilated(
        x1p, p["w1"], window_strides=(1,), padding="VALID",
        rhs_dilation=(dil1,), dimension_numbers=dn,
        precision=lax.Precision.HIGHEST)
    y1 = y1 + p["b1"][None, :, None]
    x2 = bn(y1, p["bn1_g"], p["bn1_b"], p["bn1_m"], p["bn1_v"])

    r = lax.conv_general_dilated(
        x, p["wds"], window_strides=(2,), padding="VALID",
        dimension_numbers=dn, precision=lax.Precision.HIGHEST)
    r = r + p["bds"][None, :, None]
    r = jnp.maximum(bn(r, p["bnd_g"], p["bnd_b"], p["bnd_m"], p["bnd_v"]), 0.)

    return jnp.maximum(x2 + r, 0.)


# ----------------------------------------------------------------------------
if __name__ == "__main__":
    # Module hyper-params (small, consistent with TempBlock2's constructor).
    ch_in = (4, 8)      # (ch_in0, ch_in1)
    ch_out = (8, 8)     # (ch_out0, ch_out1)
    k_size = (3, 3)     # (k0, k1)
    dil = (1, 2)        # (dil0, dil1) -- dil0 unused by the module's tcn0
    N, T = 16, 16       # N=16, t1=8 -> 128 lanes per kernel step (lane-dense)

    k0, k1 = k_size
    dil1 = dil[1]
    cin0, cin1 = ch_in
    cout0, cout1 = ch_out

    key = jax.random.PRNGKey(0)
    keys = jax.random.split(key, 20)

    p = {
        "w0":  jax.random.normal(keys[0], (cout0, cin0, k0), jnp.float32) * 0.01,
        "b0":  jax.random.normal(keys[1], (cout0,), jnp.float32) * 0.01,
        "w1":  jax.random.normal(keys[2], (cout1, cin1, k1), jnp.float32) * 0.01,
        "b1":  jax.random.normal(keys[3], (cout1,), jnp.float32) * 0.01,
        "wds": jax.random.normal(keys[4], (cout1, cin0, 1), jnp.float32) * 0.01,
        "bds": jax.random.normal(keys[5], (cout1,), jnp.float32) * 0.01,
        "bn0_g": 1.0 + 0.1 * jax.random.normal(keys[6], (cout0,), jnp.float32),
        "bn0_b": 0.1 * jax.random.normal(keys[7], (cout0,), jnp.float32),
        "bn0_m": 0.1 * jax.random.normal(keys[8], (cout0,), jnp.float32),
        "bn0_v": jax.random.uniform(keys[9], (cout0,), jnp.float32, 0.5, 1.5),
        "bn1_g": 1.0 + 0.1 * jax.random.normal(keys[10], (cout1,), jnp.float32),
        "bn1_b": 0.1 * jax.random.normal(keys[11], (cout1,), jnp.float32),
        "bn1_m": 0.1 * jax.random.normal(keys[12], (cout1,), jnp.float32),
        "bn1_v": jax.random.uniform(keys[13], (cout1,), jnp.float32, 0.5, 1.5),
        "bnd_g": 1.0 + 0.1 * jax.random.normal(keys[14], (cout1,), jnp.float32),
        "bnd_b": 0.1 * jax.random.normal(keys[15], (cout1,), jnp.float32),
        "bnd_m": 0.1 * jax.random.normal(keys[16], (cout1,), jnp.float32),
        "bnd_v": jax.random.uniform(keys[17], (cout1,), jnp.float32, 0.5, 1.5),
    }

    x = jax.random.normal(keys[18], (N, cin0, T), jnp.float32)

    out = tempblock2_forward(x, p, k0=k0, k1=k1, dil1=dil1)
    out = jax.block_until_ready(out)

    ref = jax.block_until_ready(
        reference_forward(x, p, k0=k0, k1=k1, dil1=dil1))

    assert out.shape == ref.shape, (out.shape, ref.shape)
    # Kernel uses default (single-pass bf16, f32-accumulate) MXU precision vs.
    # the HIGHEST-precision f32 reference -> tolerances relaxed accordingly.
    assert jnp.allclose(out, ref, atol=5e-3, rtol=5e-3), \
        float(jnp.max(jnp.abs(out - ref)))

    print("KERNEL_OK")
</pallas_src>

<mosaic_0001>
module attributes {stable_mosaic.version = 11 : i64} {
  func.func @tempblock2_kernel(%arg0: i32, %arg1: memref<1x12x128xf32, #tpu.memory_space<vmem>>, %arg2: memref<16x12xf32, #tpu.memory_space<vmem>>, %arg3: memref<16x1xf32, #tpu.memory_space<vmem>>, %arg4: memref<8x24xf32, #tpu.memory_space<vmem>>, %arg5: memref<8x1xf32, #tpu.memory_space<vmem>>, %arg6: memref<1x8x128xf32, #tpu.memory_space<vmem>>) attributes {dimension_semantics = [#tpu.dimension_semantics<parallel>], iteration_bounds = array<i64: 1>, scalar_prefetch = 0 : i64, scratch_operands = 0 : i64, tpu.core_type = #tpu.core_type<tc>, window_params = [{transform_indices = @transform_0, window_bounds = array<i64: 1, 12, 128>}, {pipeline_mode = #tpu.pipeline_mode<synchronous>, transform_indices = @transform_1, window_bounds = array<i64: 16, 12>}, {pipeline_mode = #tpu.pipeline_mode<synchronous>, transform_indices = @transform_2, window_bounds = array<i64: 16, 1>}, {pipeline_mode = #tpu.pipeline_mode<synchronous>, transform_indices = @transform_3, window_bounds = array<i64: 8, 24>}, {pipeline_mode = #tpu.pipeline_mode<synchronous>, transform_indices = @transform_4, window_bounds = array<i64: 8, 1>}, {transform_indices = @transform_5, window_bounds = array<i64: 1, 8, 128>}]} {
    %c0 = arith.constant 0 : index
    %c0_0 = arith.constant 0 : index
    %0 = vector.load %arg2[%c0, %c0_0] : memref<16x12xf32, #tpu.memory_space<vmem>>, vector<16x12xf32>
    %c0_1 = arith.constant 0 : index
    %c0_2 = arith.constant 0 : index
    %c0_3 = arith.constant 0 : index
    %1 = vector.load %arg1[%c0_1, %c0_2, %c0_3] : memref<1x12x128xf32, #tpu.memory_space<vmem>>, vector<1x12x128xf32>
    %2 = vector.shape_cast %1 : vector<1x12x128xf32> to vector<12x128xf32>
    %cst = arith.constant dense<0.000000e+00> : vector<16x128xf32>
    %3 = tpu.matmul %0, %2, %cst {dimension_numbers = #tpu.dot_dimension_numbers<[1], [0], [0], [1], [0, 0, 1, 1], [], []>} : vector<16x12xf32>, vector<12x128xf32>, vector<16x128xf32> -> vector<16x128xf32>
    %c0_4 = arith.constant 0 : index
    %c0_5 = arith.constant 0 : index
    %4 = vector.load %arg3[%c0_4, %c0_5] : memref<16x1xf32, #tpu.memory_space<vmem>>, vector<16x1xf32>
    %5 = vector.broadcast %4 : vector<16x1xf32> to vector<16x128xf32>
    %6 = arith.addf %3, %5 : vector<16x128xf32>
    %cst_6 = arith.constant 0.000000e+00 : f32
    %7 = vector.broadcast %cst_6 : f32 to vector<16x128xf32>
    %8 = arith.maximumf %6, %7 : vector<16x128xf32>
    %9 = vector.extract_strided_slice %8 {offsets = [0, 0], sizes = [8, 128], strides = [1, 1]} : vector<16x128xf32> to vector<8x128xf32>
    %10 = vector.extract_strided_slice %8 {offsets = [8, 0], sizes = [8, 128], strides = [1, 1]} : vector<16x128xf32> to vector<8x128xf32>
    %11 = tpu.iota {dimensions = array<i32: 1>} : vector<1x128xi32>
    %c8_i32 = arith.constant 8 : i32
    %c0_i32 = arith.constant 0 : i32
    %12 = arith.cmpi eq, %c8_i32, %c0_i32 : i32
    %c1_i32 = arith.constant 1 : i32
    %13 = arith.select %12, %c1_i32, %c8_i32 : i32
    %14 = vector.broadcast %13 : i32 to vector<1x128xi32>
    %15 = arith.remsi %11, %14 : vector<1x128xi32>
    %c0_i32_7 = arith.constant 0 : i32
    %16 = vector.broadcast %c0_i32_7 : i32 to vector<1x128xi32>
    %17 = arith.cmpi ne, %15, %16 : vector<1x128xi32>
    %c0_i32_8 = arith.constant 0 : i32
    %18 = vector.broadcast %c0_i32_8 : i32 to vector<1x128xi32>
    %19 = arith.cmpi slt, %15, %18 : vector<1x128xi32>
    %c0_i32_9 = arith.constant 0 : i32
    %20 = arith.cmpi slt, %13, %c0_i32_9 : i32
    %21 = vector.broadcast %20 : i1 to vector<1x128xi1>
    %22 = vector.broadcast %21 : vector<1x128xi1> to vector<1x128xi1>
    %23 = arith.xori %19, %22 : vector<1x128xi1>
    %24 = arith.andi %23, %17 : vector<1x128xi1>
    %25 = vector.broadcast %13 : i32 to vector<1x128xi32>
    %26 = arith.addi %15, %25 : vector<1x128xi32>
    %27 = arith.select %24, %26, %15 : vector<1x128xi1>, vector<1x128xi32>
    %cst_10 = arith.constant 0.000000e+00 : f32
    %28 = vector.broadcast %cst_10 : f32 to vector<8x2xf32>
    %29 = vector.extract_strided_slice %9 {offsets = [0, 0], sizes = [8, 126], strides = [1, 1]} : vector<8x128xf32> to vector<8x126xf32>
    %30 = tpu.concatenate %28, %29 in 1 : vector<8x2xf32>, vector<8x126xf32> -> vector<8x128xf32>
    %c2_i32 = arith.constant 2 : i32
    %31 = vector.broadcast %c2_i32 : i32 to vector<1x128xi32>
    %32 = arith.cmpi sge, %27, %31 : vector<1x128xi32>
    %cst_11 = arith.constant 0.000000e+00 : f32
    %33 = vector.shape_cast %32 : vector<1x128xi1> to vector<1x128xi1>
    %34 = vector.broadcast %33 : vector<1x128xi1> to vector<8x128xi1>
    %35 = vector.broadcast %cst_11 : f32 to vector<8x128xf32>
    %36 = arith.select %34, %30, %35 : vector<8x128xi1>, vector<8x128xf32>
    %cst_12 = arith.constant 0.000000e+00 : f32
    %37 = vector.broadcast %cst_12 : f32 to vector<8x4xf32>
    %38 = vector.extract_strided_slice %9 {offsets = [0, 0], sizes = [8, 124], strides = [1, 1]} : vector<8x128xf32> to vector<8x124xf32>
    %39 = tpu.concatenate %37, %38 in 1 : vector<8x4xf32>, vector<8x124xf32> -> vector<8x128xf32>
    %c4_i32 = arith.constant 4 : i32
    %40 = vector.broadcast %c4_i32 : i32 to vector<1x128xi32>
    %41 = arith.cmpi sge, %27, %40 : vector<1x128xi32>
    %cst_13 = arith.constant 0.000000e+00 : f32
    %42 = vector.shape_cast %41 : vector<1x128xi1> to vector<1x128xi1>
    %43 = vector.broadcast %42 : vector<1x128xi1> to vector<8x128xi1>
    %44 = vector.broadcast %cst_13 : f32 to vector<8x128xf32>
    %45 = arith.select %43, %39, %44 : vector<8x128xi1>, vector<8x128xf32>
    %46 = tpu.concatenate %9, %36, %45 in 0 : vector<8x128xf32>, vector<8x128xf32>, vector<8x128xf32> -> vector<24x128xf32>
    %c0_14 = arith.constant 0 : index
    %c0_15 = arith.constant 0 : index
    %47 = vector.load %arg4[%c0_14, %c0_15] : memref<8x24xf32, #tpu.memory_space<vmem>>, vector<8x24xf32>
    %cst_16 = arith.constant dense<0.000000e+00> : vector<8x128xf32>
    %48 = tpu.matmul %47, %46, %cst_16 {dimension_numbers = #tpu.dot_dimension_numbers<[1], [0], [0], [1], [0, 0, 1, 1], [], []>} : vector<8x24xf32>, vector<24x128xf32>, vector<8x128xf32> -> vector<8x128xf32>
    %c0_17 = arith.constant 0 : index
    %c0_18 = arith.constant 0 : index
    %49 = vector.load %arg5[%c0_17, %c0_18] : memref<8x1xf32, #tpu.memory_space<vmem>>, vector<8x1xf32>
    %50 = vector.broadcast %49 : vector<8x1xf32> to vector<8x128xf32>
    %51 = arith.addf %48, %50 : vector<8x128xf32>
    %52 = arith.addf %51, %10 : vector<8x128xf32>
    %cst_19 = arith.constant 0.000000e+00 : f32
    %53 = vector.broadcast %cst_19 : f32 to vector<8x128xf32>
    %54 = arith.maximumf %52, %53 : vector<8x128xf32>
    %c0_20 = arith.constant 0 : index
    %c0_21 = arith.constant 0 : index
    %c0_22 = arith.constant 0 : index
    %55 = vector.load %arg6[%c0_20, %c0_21, %c0_22] : memref<1x8x128xf32, #tpu.memory_space<vmem>>, vector<1x8x128xf32>
    %56 = vector.shape_cast %55 : vector<1x8x128xf32> to vector<8x128xf32>
    %57 = vector.shape_cast %54 : vector<8x128xf32> to vector<1x8x128xf32>
    tpu.vector_store %arg6[%c0_20, %c0_21, %c0_22], %57 {strides = array<i32>} : memref<1x8x128xf32, #tpu.memory_space<vmem>>, vector<1x8x128xf32>,
    return
  }
  func.func @transform_0(%arg0: i32) -> (i32, i32, i32) {
    %c0_i32 = arith.constant 0 : i32
    %c0_i32_0 = arith.constant 0 : i32
    %c0_i32_1 = arith.constant 0 : i32
    return %arg0, %c0_i32, %c0_i32_0 : i32, i32, i32
  }
  func.func @transform_1(%arg0: i32) -> (i32, i32) {
    %c0_i32 = arith.constant 0 : i32
    %c0_i32_0 = arith.constant 0 : i32
    %c0_i32_1 = arith.constant 0 : i32
    return %c0_i32, %c0_i32_0 : i32, i32
  }
  func.func @transform_2(%arg0: i32) -> (i32, i32) {
    %c0_i32 = arith.constant 0 : i32
    %c0_i32_0 = arith.constant 0 : i32
    %c0_i32_1 = arith.constant 0 : i32
    return %c0_i32, %c0_i32_0 : i32, i32
  }
  func.func @transform_3(%arg0: i32) -> (i32, i32) {
    %c0_i32 = arith.constant 0 : i32
    %c0_i32_0 = arith.constant 0 : i32
    %c0_i32_1 = arith.constant 0 : i32
    return %c0_i32, %c0_i32_0 : i32, i32
  }
  func.func @transform_4(%arg0: i32) -> (i32, i32) {
    %c0_i32 = arith.constant 0 : i32
    %c0_i32_0 = arith.constant 0 : i32
    %c0_i32_1 = arith.constant 0 : i32
    return %c0_i32, %c0_i32_0 : i32, i32
  }
  func.func @transform_5(%arg0: i32) -> (i32, i32, i32) {
    %c0_i32 = arith.constant 0 : i32
    %c0_i32_0 = arith.constant 0 : i32
    %c0_i32_1 = arith.constant 0 : i32
    return %arg0, %c0_i32, %c0_i32_0 : i32, i32, i32
  }
}

</mosaic_0001>

<llo_original>
// kernel: tpu_custom_call.1
$region0: #{tpu_custom_call.1}
  #allocation0 [shape = 'u32[]', space=smem, size = 0x4, offset = 0x4, fixed_abs, tag = 'smem constant byte address 0x4 - core index']
  #allocation1 [shape = 'u32[72,128]{1,0:T(1,128)}', space=vmem, size = 0x9000, scoped, tag = 'internal scratch']
  %s0 = inlined_call_operand.vmem [shape: f32[1,12,128], index: 0, kind: input, shape index: {}]
  %s1 = inlined_call_operand.vmem [shape: f32[16,12], index: 1, kind: input, shape index: {}]
  %s2 = inlined_call_operand.vmem [shape: f32[16,1], index: 2, kind: input, shape index: {}]
  %s3 = inlined_call_operand.vmem [shape: f32[8,24], index: 3, kind: input, shape index: {}]
  %s4 = inlined_call_operand.vmem [shape: f32[8,1], index: 4, kind: input, shape index: {}]
  %s5 = inlined_call_operand.hbm [shape: f32[1,8,128], index: 5, kind: output, shape index: {}]
  %s6 = sld [smem:[#allocation0]]
  $region30: #{tpu_custom_call.1} parent=0
    _
  %s8 = ssub.s32 1, %s6
  %s9 = scalar_select 0, %s8, %s6
  $region1: #{tpu_custom_call.1} parent=0
    #allocation2 [shape = 'u8[4096]{0}', space=vmem, size = 0x1000, scoped, tag = 'output window, operand 0, single buffered']
    #allocation3 [shape = 's32[1]{0}', space=sflag, size = 0x4, scoped, tag = 'scoped memory for tpu_custom_call.1']
    %10 = vsyncpa [#allocation3], 0
    // Predicated region
    $region2: #{tpu_custom_call.1} parent=1 // pred_check
      _
    $region3: #{tpu_custom_call.1} parent=1 // pred_check_branch
      %12 = sbr.rel (0) target = $region5
    $region4: #{tpu_custom_call.1} parent=1 // pred_region
      _
    $region5: #{tpu_custom_call.1} parent=1 // pred_fallthru
      _
    // Predicated region
    $region6: #{tpu_custom_call.1} parent=1 // pred_check
      _
    $region7: #{tpu_custom_call.1} parent=1 // pred_check_branch
      %14 = sbr.rel (0) target = $region9
    $region8: #{tpu_custom_call.1} parent=1 // pred_region
      _
    $region9: #{tpu_custom_call.1} parent=1 // pred_fallthru
      _
    // Predicated region
    $region10: #{tpu_custom_call.1} parent=1 // pred_check
      _
    $region11: #{tpu_custom_call.1} parent=1 // pred_check_branch
      %16 = sbr.rel (0) target = $region13
    $region12: #{tpu_custom_call.1} parent=1 // pred_region
      _
    $region13: #{tpu_custom_call.1} parent=1 // pred_fallthru
      _
    // Predicated region
    $region14: #{tpu_custom_call.1} parent=1 // pred_check
      _
    $region15: #{tpu_custom_call.1} parent=1 // pred_check_branch
      %18 = sbr.rel (0) target = $region17
    $region16: #{tpu_custom_call.1} parent=1 // pred_region
      _
    $region17: #{tpu_custom_call.1} parent=1 // pred_fallthru
      _
    // Predicated region
    $region18: #{tpu_custom_call.1} parent=1 // pred_check
      _
    $region19: #{tpu_custom_call.1} parent=1 // pred_check_branch
      %20 = sbr.rel (0) target = $region21
    $region20: #{tpu_custom_call.1} parent=1 // pred_region
      _
    $region21: #{tpu_custom_call.1} parent=1 // pred_fallthru
      _
    %v21 = vld [vmem:[%s1] sm:$0xff]
    %v22 = vld [vmem:[%s1 + $0x8] sm:$0xff]
    %v23 = vld [vmem:[%s0] sm:$0xff]
    %v24 = vld [vmem:[%s0 + $0x8] sm:$0xf]
    %v25 = vld [vmem:[%s2] sm:$0xff]
    %v26 = vld [vmem:[%s2 + $0x8] sm:$0xff]
    %28 = vset.pattern.permute.xlu0 0
    %29 = vperm.xlu0 %28, %v25
    %v30 = vpop.permute.xlu0 %29
    %33 = vset.pattern.permute.xlu0 0
    %34 = vperm.xlu0 %33, %v26
    %v35 = vpop.permute.xlu0 %34
    %vm37 = vcmask 97280
    %v39 = vsel %vm37, %v21, 0
    %v42 = vsel %vm37, %v22, 0
    %vm44 = vcmask 1043456
    %v46 = vsel %vm44, %v24, 0
    %48 = vmatpush.msra.mxu0 0.0
    %49 = vmatpush.msra.mxu0 0.0
    %50 = vmatpush.msra.mxu0 0.0
    %51 = vmatpush.msra.mxu0 0.0
    %52 = vmatpush.msra.mxu0 0.0
    %53 = vmatpush.msra.mxu0 0.0
    %54 = vmatpush.msra.mxu0 0.0
    %55 = vmatpush.msra.mxu0 0.0
    %56 = vmatpush.msra.mxu0 0.0
    %57 = vmatpush.msra.mxu0 0.0
    %58 = vmatpush.msra.mxu0 0.0
    %59 = vmatpush.msra.mxu0 0.0
    %60 = vmatpush.msra.mxu0 0.0
    %61 = vmatpush.msra.mxu0 0.0
    %62 = vmatpush.msra.mxu0 %v46
    %63 = vmatpush.msra.mxu0 %v23
    %64 = vmatmul.f32.gmra.mxu0 %v39
    %v65 = vpop.f32.mrf.mxu0
    %v66 = vadd.f32 %v30, %v65
    %67 = vmatmul.f32.gmra.mxu0 %v42
    %v68 = vpop.f32.mrf.mxu0
    %v69 = vadd.f32 %v35, %v68
    %70 = vdwg.mxu0
    %v71 = vmax.f32 %v66, 0.0
    %v72 = vmax.f32 %v69, 0.0
    %v73 = vlaneseq
    %v74 = vand.u32 %v73, 127
    %vm75 = vcmp.lt.s32.totalorder %v74, 0
    %v76 = vsub.s32 0, %v74
    %v77 = vsel %vm75, %v76, %v74
    %v78 = vshrl.u32 %v77, 3
    %v79 = vand.u32 %v77, 7
    %v80 = vsub.s32 0, %v79
    %v81 = vsel %vm75, %v80, %v79
    %vm82 = vcmp.ne.s32.totalorder %v81, 0
    %vm83 = vcmp.lt.s32.totalorder %v81, 0
    %vm84 = vmand %vm83, %vm82
    %v85 = vadd.s32 %v81, 8
    %v86 = vsel %vm84, %v85, %v81
    %88 = vrot.lane.b32.xlu0 %v71, 2
    %v89 = vpop.permute.xlu0 %88
    %vm91 = vcmask 15360
    %v92 = vsel %vm91, 0.0, %v89
    %vm93 = vcmp.ge.s32.totalorder %v86, 2
    %v94 = vsel %vm93, 1, 0
    %vm95 = vcmp.eq.s32.totalorder %v94, 1
    %v96 = vsel %vm95, %v92, 0.0
    %97 = vrot.lane.b32.xlu0 %v71, 4
    %v98 = vpop.permute.xlu0 %97
    %vm100 = vcmask 31744
    %v101 = vsel %vm100, 0.0, %v98
    %vm102 = vcmp.ge.s32.totalorder %v86, 4
    %v103 = vsel %vm102, 1, 0
    %vm104 = vcmp.eq.s32.totalorder %v103, 1
    %v105 = vsel %vm104, %v101, 0.0
    %v106 = vld [vmem:[%s3] sm:$0xff]
    %v107 = vld [vmem:[%s4] sm:$0xff]
    %109 = vset.pattern.permute.xlu0 0
    %110 = vperm.xlu0 %109, %v107
    %v111 = vpop.permute.xlu0 %110
    %vm113 = vcmask 195584
    %v115 = vsel %vm113, %v106, 0
    %117 = vmatpush.msra.mxu0 0.0
    %118 = vmatpush.msra.mxu0 0.0
    %119 = vmatpush.msra.mxu0 0.0
    %120 = vmatpush.msra.mxu0 0.0
    %121 = vmatpush.msra.mxu0 0.0
    %122 = vmatpush.msra.mxu0 0.0
    %123 = vmatpush.msra.mxu0 0.0
    %124 = vmatpush.msra.mxu0 0.0
    %125 = vmatpush.msra.mxu0 0.0
    %126 = vmatpush.msra.mxu0 0.0
    %127 = vmatpush.msra.mxu0 0.0
    %128 = vmatpush.msra.mxu0 0.0
    %129 = vmatpush.msra.mxu0 0.0
    %130 = vmatpush.msra.mxu0 %v105
    %131 = vmatpush.msra.mxu0 %v96
    %132 = vmatpush.msra.mxu0 %v71
    %133 = vmatmul.f32.gmra.mxu0 %v115
    %v134 = vpop.f32.mrf.mxu0
    %v135 = vadd.f32 %v111, %v134
    %136 = vdwg.mxu0
    %v137 = vadd.f32 %v135, %v72
    %v138 = vmax.f32 %v137, 0.0
    %139 = vst [vmem:[#allocation2] sm:$0xff] %v138
    // Predicated region
    $region22: #{tpu_custom_call.1} parent=1 // pred_check
      _
    $region23: #{tpu_custom_call.1} parent=1 // pred_check_branch
      %141 = sbr.rel (0) target = $region25
    $region24: #{tpu_custom_call.1} parent=1 // pred_region
      %143 = vsyncadd [#allocation3], 0
      %s145 = sshll.u32 [#allocation2], 4
      %s146 = int_to_ptr.vmem [resolvable:$true] %s145
      %s147 = sshll.u32 %s5, 4
      %s148 = int_to_ptr.hbm [resolvable:$true] %s147
      %150 = dma.vmem_to_hbm [thread:$0]  %s146, 128, %s148, [#allocation3]
    $region25: #{tpu_custom_call.1} parent=1 // pred_fallthru
      _
    // Predicated region
    $region26: #{tpu_custom_call.1} parent=1 // pred_check
      _
    $region27: #{tpu_custom_call.1} parent=1 // pred_check_branch
      %152 = sbr.rel (0) target = $region29
    $region28: #{tpu_custom_call.1} parent=1 // pred_region
      %154 = dma.done [#allocation3], 128
    $region29: #{tpu_custom_call.1} parent=1 // pred_fallthru
      _
    %155 = vsyncpa [#allocation3], 1

</llo_original>
